<compile_context>
chip_gen: v6e
topology: v6e:2x2x1
jax: 0.10.0
libtpu: 0.0.40
codegen_flags: <defaults>
</compile_context>

<pallas_src>
import jax
import jax.numpy as jnp
from jax.experimental import pallas as pl
from jax.experimental.pallas import tpu as pltpu

EPS = 1e-5


def _adabn_kernel(x_ref, gamma_ref, beta_ref, ab_ref, o_ref):
    # x_ref:     (N, TC, L)  input tile in VMEM (f32 or bf16)
    # gamma_ref: (TC, 1) f32 in VMEM
    # beta_ref:  (TC, 1) f32 in VMEM
    # ab_ref:    (2,)    f32 in SMEM  -> [a, b]
    # o_ref:     (N, TC, L)  output tile in VMEM (same dtype as x)
    x = x_ref[...]
    xf = x.astype(jnp.float32)
    n, _, l = xf.shape
    inv_count = 1.0 / float(n * l)  # block spans full N and full L -> exact count

    # Single-pass per-channel statistics.
    s1 = jnp.sum(xf, axis=0)                                   # (TC, L)  VPU adds
    s2 = jnp.sum(xf * xf, axis=0)                              # (TC, L)
    mean = jnp.sum(s1, axis=-1, keepdims=True) * inv_count     # (TC, 1)  XLU reduce
    ex2 = jnp.sum(s2, axis=-1, keepdims=True) * inv_count      # (TC, 1)
    var = ex2 - mean * mean                                    # biased variance
    inv_std = jax.lax.rsqrt(var + EPS)                         # (TC, 1)

    a = ab_ref[0]
    b = ab_ref[1]
    g_inv = gamma_ref[...] * inv_std                           # (TC, 1)
    scale = (b * g_inv + a)[None]                              # (1, TC, 1)
    shift = (b * (beta_ref[...] - g_inv * mean))[None]         # (1, TC, 1)

    # Hot loop: one mul + one add per element.
    o_ref[...] = (xf * scale + shift).astype(o_ref.dtype)


def _pick_channel_tile(n, c, l, itemsize):
    """Largest multiple-of-8 channel tile whose double-buffered in+out blocks
    stay inside a v7x-safe VMEM budget (~8 MiB of block data)."""
    if c <= 8:
        return c  # full-dim block (allowed even if not a multiple of 8)
    budget = 8 * 1024 * 1024
    per_chan = 4 * n * l * itemsize  # 2 buffers x (input block + output block)
    tc = min(c, max(budget // max(per_chan, 1), 8))
    return max((tc // 8) * 8, 8)


def adaptive_batch_norm_1d(x, gamma, beta, a, b):
    """x: (N, C, L).  gamma, beta: (C,).  a, b: scalars.  Returns a*x + b*BN(x)."""
    n, c, l = x.shape
    tc = _pick_channel_tile(n, c, l, x.dtype.itemsize)
    grid = (pl.cdiv(c, tc),)

    gamma2 = gamma.reshape(c, 1).astype(jnp.float32)
    beta2 = beta.reshape(c, 1).astype(jnp.float32)
    ab = jnp.concatenate([
        jnp.asarray(a, jnp.float32).reshape(1),
        jnp.asarray(b, jnp.float32).reshape(1),
    ])

    return pl.pallas_call(
        _adabn_kernel,
        out_shape=jax.ShapeDtypeStruct((n, c, l), x.dtype),
        grid=grid,
        in_specs=[
            pl.BlockSpec((n, tc, l), lambda ci: (0, ci, 0)),          # x
            pl.BlockSpec((tc, 1), lambda ci: (ci, 0)),                # gamma
            pl.BlockSpec((tc, 1), lambda ci: (ci, 0)),                # beta
            pl.BlockSpec(memory_space=pltpu.MemorySpace.SMEM),        # [a, b]
        ],
        out_specs=pl.BlockSpec((n, tc, l), lambda ci: (0, ci, 0)),
        compiler_params=pltpu.CompilerParams(
            dimension_semantics=("parallel",),      # shard C-tiles across TCs (v7x)
            vmem_limit_bytes=32 * 1024 * 1024,
        ),
    )(x, gamma2, beta2, ab)


def _reference(x, gamma, beta, a, b):
    mean = jnp.mean(x, axis=(0, 2), keepdims=True)
    var = jnp.mean((x - mean) ** 2, axis=(0, 2), keepdims=True)
    bn = (x - mean) / jnp.sqrt(var + EPS) * gamma.reshape(1, -1, 1) + beta.reshape(1, -1, 1)
    return a * x + b * bn


if __name__ == "__main__":
    key = jax.random.PRNGKey(0)
    kx, kg, kb = jax.random.split(key, 3)

    N, C, L = 2, 4, 16
    x = jax.random.normal(kx, (N, C, L), dtype=jnp.float32)

    # Deterministic parameter values (torch.FloatTensor(1,1,1) is uninitialized;
    # BatchNorm1d default affine init is gamma=1, beta=0 — use slightly
    # non-trivial deterministic values to exercise the math).
    gamma = 1.0 + 0.1 * jax.random.normal(kg, (C,), dtype=jnp.float32)
    beta = 0.1 * jax.random.normal(kb, (C,), dtype=jnp.float32)
    a = 0.75
    b = 1.25

    out = adaptive_batch_norm_1d(x, gamma, beta, a, b)
    out = jax.block_until_ready(out)

    ref = _reference(x, gamma, beta, a, b)
    assert out.shape == (N, C, L)
    assert jnp.allclose(out, ref, atol=1e-5, rtol=1e-5), "mismatch vs reference"

    print("KERNEL_OK")
</pallas_src>

<mosaic_0001>
module attributes {stable_mosaic.version = 11 : i64} {
  func.func @_adabn_kernel(%arg0: i32, %arg1: memref<2x4x16xf32, #tpu.memory_space<vmem>>, %arg2: memref<4x1xf32, #tpu.memory_space<vmem>>, %arg3: memref<4x1xf32, #tpu.memory_space<vmem>>, %arg4: memref<2xf32, #tpu.memory_space<smem>>, %arg5: memref<2x4x16xf32, #tpu.memory_space<vmem>>) attributes {dimension_semantics = [#tpu.dimension_semantics<parallel>], iteration_bounds = array<i64: 1>, scalar_prefetch = 0 : i64, scratch_operands = 0 : i64, tpu.core_type = #tpu.core_type<tc>, window_params = [{transform_indices = @transform_0, window_bounds = array<i64: 2, 4, 16>}, {transform_indices = @transform_1, window_bounds = array<i64: 4, 1>}, {transform_indices = @transform_2, window_bounds = array<i64: 4, 1>}, {transform_indices = @transform_3, window_bounds = array<i64: 2>}, {transform_indices = @transform_4, window_bounds = array<i64: 2, 4, 16>}]} {
    %c0 = arith.constant 0 : index
    %c0_0 = arith.constant 0 : index
    %c0_1 = arith.constant 0 : index
    %0 = vector.load %arg1[%c0, %c0_0, %c0_1] : memref<2x4x16xf32, #tpu.memory_space<vmem>>, vector<2x4x16xf32>
    %cst = arith.constant dense<0.000000e+00> : vector<4x16xf32>
    %1 = vector.multi_reduction <add>, %0, %cst [0] : vector<2x4x16xf32> to vector<4x16xf32>
    %2 = arith.mulf %0, %0 : vector<2x4x16xf32>
    %cst_2 = arith.constant dense<0.000000e+00> : vector<4x16xf32>
    %3 = vector.multi_reduction <add>, %2, %cst_2 [0] : vector<2x4x16xf32> to vector<4x16xf32>
    %cst_3 = arith.constant dense<0.000000e+00> : vector<4xf32>
    %4 = vector.multi_reduction <add>, %1, %cst_3 [1] : vector<4x16xf32> to vector<4xf32>
    %5 = vector.shape_cast %4 : vector<4xf32> to vector<4x1xf32>
    %cst_4 = arith.constant 3.125000e-02 : f32
    %6 = vector.broadcast %cst_4 : f32 to vector<4x1xf32>
    %7 = arith.mulf %5, %6 : vector<4x1xf32>
    %cst_5 = arith.constant dense<0.000000e+00> : vector<4xf32>
    %8 = vector.multi_reduction <add>, %3, %cst_5 [1] : vector<4x16xf32> to vector<4xf32>
    %9 = vector.shape_cast %8 : vector<4xf32> to vector<4x1xf32>
    %cst_6 = arith.constant 3.125000e-02 : f32
    %10 = vector.broadcast %cst_6 : f32 to vector<4x1xf32>
    %11 = arith.mulf %9, %10 : vector<4x1xf32>
    %12 = arith.mulf %7, %7 : vector<4x1xf32>
    %13 = arith.subf %11, %12 : vector<4x1xf32>
    %cst_7 = arith.constant 9.99999974E-6 : f32
    %14 = vector.broadcast %cst_7 : f32 to vector<4x1xf32>
    %15 = arith.addf %13, %14 : vector<4x1xf32>
    %16 = math.rsqrt %15 : vector<4x1xf32>
    %c0_8 = arith.constant 0 : index
    %17 = memref.load %arg4[%c0_8] : memref<2xf32, #tpu.memory_space<smem>>
    %c1 = arith.constant 1 : index
    %18 = memref.load %arg4[%c1] : memref<2xf32, #tpu.memory_space<smem>>
    %c0_9 = arith.constant 0 : index
    %c0_10 = arith.constant 0 : index
    %19 = vector.load %arg2[%c0_9, %c0_10] : memref<4x1xf32, #tpu.memory_space<vmem>>, vector<4x1xf32>
    %20 = arith.mulf %19, %16 : vector<4x1xf32>
    %21 = vector.broadcast %18 : f32 to vector<4x1xf32>
    %22 = arith.mulf %21, %20 : vector<4x1xf32>
    %23 = vector.broadcast %17 : f32 to vector<4x1xf32>
    %24 = arith.addf %22, %23 : vector<4x1xf32>
    %25 = vector.shape_cast %24 : vector<4x1xf32> to vector<1x4x1xf32>
    %c0_11 = arith.constant 0 : index
    %c0_12 = arith.constant 0 : index
    %26 = vector.load %arg3[%c0_11, %c0_12] : memref<4x1xf32, #tpu.memory_space<vmem>>, vector<4x1xf32>
    %27 = arith.mulf %20, %7 : vector<4x1xf32>
    %28 = arith.subf %26, %27 : vector<4x1xf32>
    %29 = vector.broadcast %18 : f32 to vector<4x1xf32>
    %30 = arith.mulf %29, %28 : vector<4x1xf32>
    %31 = vector.shape_cast %30 : vector<4x1xf32> to vector<1x4x1xf32>
    %32 = vector.broadcast %25 : vector<1x4x1xf32> to vector<2x4x16xf32>
    %33 = arith.mulf %0, %32 : vector<2x4x16xf32>
    %34 = vector.broadcast %31 : vector<1x4x1xf32> to vector<2x4x16xf32>
    %35 = arith.addf %33, %34 : vector<2x4x16xf32>
    %c0_13 = arith.constant 0 : index
    %c0_14 = arith.constant 0 : index
    %c0_15 = arith.constant 0 : index
    %36 = vector.load %arg5[%c0_13, %c0_14, %c0_15] : memref<2x4x16xf32, #tpu.memory_space<vmem>>, vector<2x4x16xf32>
    tpu.vector_store %arg5[%c0_13, %c0_14, %c0_15], %35 {strides = array<i32>} : memref<2x4x16xf32, #tpu.memory_space<vmem>>, vector<2x4x16xf32>,
    return
  }
  func.func @transform_0(%arg0: i32) -> (i32, i32, i32) {
    %c0_i32 = arith.constant 0 : i32
    %c0_i32_0 = arith.constant 0 : i32
    %c0_i32_1 = arith.constant 0 : i32
    return %c0_i32, %arg0, %c0_i32_0 : i32, i32, i32
  }
  func.func @transform_1(%arg0: i32) -> (i32, i32) {
    %c0_i32 = arith.constant 0 : i32
    %c0_i32_0 = arith.constant 0 : i32
    return %arg0, %c0_i32 : i32, i32
  }
  func.func @transform_2(%arg0: i32) -> (i32, i32) {
    %c0_i32 = arith.constant 0 : i32
    %c0_i32_0 = arith.constant 0 : i32
    return %arg0, %c0_i32 : i32, i32
  }
  func.func @transform_3(%arg0: i32) -> i32 {
    %c0_i32 = arith.constant 0 : i32
    %c0_i32_0 = arith.constant 0 : i32
    return %c0_i32 : i32
  }
  func.func @transform_4(%arg0: i32) -> (i32, i32, i32) {
    %c0_i32 = arith.constant 0 : i32
    %c0_i32_0 = arith.constant 0 : i32
    %c0_i32_1 = arith.constant 0 : i32
    return %c0_i32, %arg0, %c0_i32_0 : i32, i32, i32
  }
}

</mosaic_0001>

<llo_original>
// kernel: tpu_custom_call.1
$region0: #{tpu_custom_call.1}
  #allocation0 [shape = 'u32[]', space=smem, size = 0x4, offset = 0x4, fixed_abs, tag = 'smem constant byte address 0x4 - core index']
  #allocation1 [shape = 'u32[144,128]{1,0:T(1,128)}', space=vmem, size = 0x12000, scoped, tag = 'internal scratch']
  %s0 = inlined_call_operand.vmem [shape: f32[2,4,16], index: 0, kind: input, shape index: {}]
  %s1 = inlined_call_operand.vmem [shape: f32[4,1], index: 1, kind: input, shape index: {}]
  %s2 = inlined_call_operand.vmem [shape: f32[4,1], index: 2, kind: input, shape index: {}]
  %s3 = inlined_call_operand.vmem [shape: f32[2], index: 3, kind: input, shape index: {}]
  %s4 = inlined_call_operand.hbm [shape: f32[2,4,16], index: 4, kind: output, shape index: {}]
  %s5 = sld [smem:[#allocation0]]
  $region30: #{tpu_custom_call.1} parent=0
    _
  %s7 = ssub.s32 1, %s5
  %s8 = scalar_select 0, %s7, %s5
  $region1: #{tpu_custom_call.1} parent=0
    #allocation2 [shape = 'u8[512]{0}', space=smem, size = 0x200, scoped, tag = 'input window, operand 3, single buffered']
    #allocation3 [shape = 's32[1]{0}', space=sflag, size = 0x4, scoped, tag = 'scoped memory for tpu_custom_call.1']
    #allocation4 [shape = 's32[1]{0}', space=sflag, size = 0x4, scoped, tag = 'scoped memory for tpu_custom_call.1']
    #allocation5 [shape = 'u8[4096]{0}', space=vmem, size = 0x1000, scoped, tag = 'output window, operand 0, single buffered']
    %9 = vsyncpa [#allocation4], 0
    %10 = vsyncpa [#allocation3], 0
    // Predicated region
    $region2: #{tpu_custom_call.1} parent=1 // pred_check
      _
    $region3: #{tpu_custom_call.1} parent=1 // pred_check_branch
      %12 = sbr.rel (0) target = $region5
    $region4: #{tpu_custom_call.1} parent=1 // pred_region
      _
    $region5: #{tpu_custom_call.1} parent=1 // pred_fallthru
      _
    // Predicated region
    $region6: #{tpu_custom_call.1} parent=1 // pred_check
      _
    $region7: #{tpu_custom_call.1} parent=1 // pred_check_branch
      %14 = sbr.rel (0) target = $region9
    $region8: #{tpu_custom_call.1} parent=1 // pred_region
      _
    $region9: #{tpu_custom_call.1} parent=1 // pred_fallthru
      _
    // Predicated region
    $region10: #{tpu_custom_call.1} parent=1 // pred_check
      _
    $region11: #{tpu_custom_call.1} parent=1 // pred_check_branch
      %16 = sbr.rel (0) target = $region13
    $region12: #{tpu_custom_call.1} parent=1 // pred_region
      _
    $region13: #{tpu_custom_call.1} parent=1 // pred_fallthru
      _
    // Predicated region
    $region14: #{tpu_custom_call.1} parent=1 // pred_check
      _
    $region15: #{tpu_custom_call.1} parent=1 // pred_check_branch
      %18 = sbr.rel (0) target = $region17
    $region16: #{tpu_custom_call.1} parent=1 // pred_region
      %s20 = ssub.s32 16, 16
      %21 = vsyncadd [#allocation4], %s20
      %s23 = sshll.u32 %s3, 4
      %s24 = int_to_ptr.vmem [resolvable:$true] %s23
      %26 = dma.vmem_to_smem %s24, 16, [#allocation2], [#allocation4]
    $region17: #{tpu_custom_call.1} parent=1 // pred_fallthru
      _
    // Predicated region
    $region18: #{tpu_custom_call.1} parent=1 // pred_check
      _
    $region19: #{tpu_custom_call.1} parent=1 // pred_check_branch
      %28 = sbr.rel (0) target = $region21
    $region20: #{tpu_custom_call.1} parent=1 // pred_region
      %29 = dma.done [#allocation4], 16
    $region21: #{tpu_custom_call.1} parent=1 // pred_fallthru
      _
    %30 = sfence
    %v31 = vld [vmem:[%s0] sm:$0xf]
    %v32 = vld [vmem:[%s0 + $0x4] sm:$0xf]
    %vm33 = vcmask 125952
    %v34 = vsel %vm33, %v31, 0.0
    %v35 = vsel %vm33, %v32, 0.0
    %v36 = vadd.f32 %v34, %v35
    %v37 = vmul.f32 %v31, %v31
    %v38 = vmul.f32 %v32, %v32
    %v39 = vsel %vm33, %v37, 0.0
    %v40 = vsel %vm33, %v38, 0.0
    %v41 = vadd.f32 %v39, %v40
    %v42 = vsel %vm33, %v36, 0.0
    %43 = vadd.xlane.f32.xlu0 %v42
    %v44 = vpop.xlane.xlu0 %43
    %v45 = vmul.f32 %v44, 0.03125
    %v46 = vsel %vm33, %v41, 0.0
    %47 = vadd.xlane.f32.xlu0 %v46
    %v48 = vpop.xlane.xlu0 %47
    %v49 = vmul.f32 %v48, 0.03125
    %v50 = vmul.f32 %v45, %v45
    %v51 = vsub.f32 %v49, %v50
    %v52 = vadd.f32 %v51, 1e-05
    %v53 = vrsqrt.pop %v52
    %s54 = sld [smem:[#allocation2]]
    %s55 = sld [smem:[#allocation2 + $0x1]]
    %v56 = vld [vmem:[%s1] sm:$0xf]
    %v57 = vmul.f32 %v56, %v53
    %v58 = vstv %s55
    %v59 = vmul.f32 %v58, %v57
    %v60 = vstv %s54
    %v61 = vadd.f32 %v59, %v60
    %v62 = vld [vmem:[%s2] sm:$0xf]
    %v63 = vmul.f32 %v57, %v45
    %v64 = vsub.f32 %v62, %v63
    %v65 = vmul.f32 %v58, %v64
    %67 = vset.pattern.permute.xlu0 0
    %68 = vperm.xlu0 %67, %v61
    %v69 = vpop.permute.xlu0 %68
    %v71 = vmul.f32 %v31, %v69
    %v72 = vmul.f32 %v32, %v69
    %74 = vset.pattern.permute.xlu0 0
    %75 = vperm.xlu0 %74, %v65
    %v76 = vpop.permute.xlu0 %75
    %v78 = vadd.f32 %v71, %v76
    %v79 = vadd.f32 %v72, %v76
    %80 = vst.msk [vmem:[#allocation5] sm:$0xf] %vm33, %v78
    %81 = vst.msk [vmem:[#allocation5 + $0x4] sm:$0xf] %vm33, %v79
    // Predicated region
    $region22: #{tpu_custom_call.1} parent=1 // pred_check
      _
    $region23: #{tpu_custom_call.1} parent=1 // pred_check_branch
      %83 = sbr.rel (0) target = $region25
    $region24: #{tpu_custom_call.1} parent=1 // pred_region
      %s85 = ssub.s32 128, 128
      %86 = vsyncadd [#allocation3], %s85
      %s87 = sshll.u32 [#allocation5], 4
      %s88 = int_to_ptr.vmem [resolvable:$true] %s87
      %93 = dma.vmem_to_hbm [thread:$0]  %s88, 128, %s4, [#allocation3], 64, 64, 4
    $region25: #{tpu_custom_call.1} parent=1 // pred_fallthru
      _
    // Predicated region
    $region26: #{tpu_custom_call.1} parent=1 // pred_check
      _
    $region27: #{tpu_custom_call.1} parent=1 // pred_check_branch
      %95 = sbr.rel (0) target = $region29
    $region28: #{tpu_custom_call.1} parent=1 // pred_region
      %96 = dma.done [#allocation3], 128
    $region29: #{tpu_custom_call.1} parent=1 // pred_fallthru
      _
    %97 = vsyncpa [#allocation3], 1
    %98 = vsyncpa [#allocation4], 1

</llo_original>
